<compile_context>
chip_gen: v5e
topology: v5e:2x2
jax: 0.10.0
libtpu: 0.0.40
codegen_flags: <defaults>
</compile_context>

<pallas_src>
import numpy as np
import jax
import jax.numpy as jnp
from jax import lax
from jax.experimental import pallas as pl
from jax.experimental.pallas import tpu as pltpu

THRESHOLD = 0.1   # `threshold` global in the reference code
ALPHA = 0.3       # args.alpha > 0  -> regularization path enabled


def _l2_normalize(v):
    # matches F.normalize(p=2, dim=1) incl. eps clamp; rsqrt stays on the EUP
    n2 = jnp.sum(v * v, axis=-1, keepdims=True)
    return v * lax.rsqrt(jnp.maximum(n2, 1e-24))


def _dot_t(a, b):
    # a @ b.T on the MXU; bf16 operands, f32 accumulation (single systolic pass)
    return lax.dot_general(a, b, (((1,), (1,)), ((), ())),
                           preferred_element_type=jnp.float32)


def _loss_kernel(x_ref, y_ref, lbl_ref, p_ref, o_ref):
    B, D = x_ref.shape
    C = lbl_ref.shape[1]
    T = THRESHOLD

    x = x_ref[...]          # (B, D) f32
    y = y_ref[...]          # (B, D) f32
    lbl = lbl_ref[...]      # (B, C) f32, exactly 0/1
    p = p_ref[...]          # (C, D) f32

    # L2-normalize features; labels are NOT normalized (only their sign matters).
    xb = _l2_normalize(x).astype(jnp.bfloat16)
    yb = _l2_normalize(y).astype(jnp.bfloat16)
    pb = _l2_normalize(p).astype(jnp.bfloat16)

    # row label count; `single` = row has <= 1 label (column vector, lane-broadcast).
    row_sum = jnp.sum(lbl, axis=-1, keepdims=True)        # (B, 1)  (also = p_num partial)
    single = (row_sum <= 1.0).astype(jnp.float32)         # (B, 1)
    # aug @ aug.T = lbl@lbl.T + single_i*s_j + single_j*s_i + C*single_i*single_j
    # == 0 exactly iff both rows have >1 label AND their label sets are disjoint.
    # NOTE: exactness relies on small non-negative integer operands (exact in
    # bf16, f32 accumulation) — do not switch to fp8 or soft/negative labels.
    aug = (lbl + single).astype(jnp.bfloat16)              # (B, C)

    # Six small MXU matmuls; every result block starts at lane/sublane offset 0.
    cos = _dot_t(xb, pb)        # (B, C)
    cos_t = _dot_t(yb, pb)      # (B, C)
    x_sim = _dot_t(xb, xb)      # (B, B)
    t_sim = _dot_t(yb, yb)      # (B, B)
    xt_sim = _dot_t(xb, yb)     # (B, B)
    gram = _dot_t(aug, aug)     # (B, B)

    # Per-element masked contributions (all f32; labels are exactly 0/1 so
    # lbl / (1 - lbl) reproduce the `== 1` / `== 0` masks of the reference).
    pos_e = lbl * ((1.0 - cos) + (1.0 - cos_t))
    neg_e = (1.0 - lbl) * (jnp.maximum(cos - T, 0.0) + jnp.maximum(cos_t - T, 0.0))
    zm = (gram == 0.0).astype(jnp.float32)
    reg_e = zm * (jnp.maximum(x_sim - T, 0.0)
                  + jnp.maximum(t_sim - T, 0.0)
                  + jnp.maximum(xt_sim - T, 0.0))

    # Lane-wise partial reductions -> (B, 1) each; row_sum is the p_num partial.
    r_pos = jnp.sum(pos_e, axis=-1, keepdims=True)
    r_neg = jnp.sum(neg_e, axis=-1, keepdims=True)
    r_z = jnp.sum(zm, axis=-1, keepdims=True)
    r_reg = jnp.sum(reg_e, axis=-1, keepdims=True)

    # Pack the five partials at distinct lanes -> ONE final cross-sublane reduce.
    lane = lax.broadcasted_iota(jnp.int32, (B, 8), 1)
    packed = jnp.where(lane == 0, row_sum,
             jnp.where(lane == 1, r_pos,
             jnp.where(lane == 2, r_neg,
             jnp.where(lane == 3, r_z,
             jnp.where(lane == 4, r_reg, 0.0)))))
    tot = jnp.sum(packed, axis=0, keepdims=True)           # (1, 8)

    p_num = tot[0, 0]
    pos_sum = tot[0, 1]
    neg_sum = tot[0, 2]
    zcount = tot[0, 3]
    reg_sum = tot[0, 4]
    n_num = jnp.float32(B * C) - p_num

    reg = jnp.where(zcount > 0.0,
                    ALPHA * reg_sum / jnp.maximum(zcount, 1.0),
                    0.0)
    loss = pos_sum / p_num + neg_sum / n_num + reg
    o_ref[...] = loss.reshape(1, 1)


@jax.jit
def multimodal_proxy_loss(x, y, label, proxies):
    # astype is a no-op when dtypes already match -> no extra XLA ops emitted.
    x = x.astype(jnp.float32)
    y = y.astype(jnp.float32)
    label = label.astype(jnp.float32)
    proxies = proxies.astype(jnp.float32)

    B, D = x.shape
    C = label.shape[1]
    # TODO(synk): for large B/C, tile over B with a grid
    # (dimension_semantics=("parallel", ..., "arbitrary") to use v7x's 2 TCs),
    # block the BxB reg grams, and raise vmem_limit_bytes (v7x: 64 MiB VMEM).

    flops = 2 * D * (2 * B * C + 3 * B * B) + 2 * C * B * B
    cost = pl.CostEstimate(
        flops=flops,
        transcendentals=2 * B + C,                    # one rsqrt per normalized row
        bytes_accessed=4 * (2 * B * D + C * D + B * C + 1))

    out = pl.pallas_call(
        _loss_kernel,
        out_shape=jax.ShapeDtypeStruct((1, 1), jnp.float32),
        in_specs=[pl.BlockSpec(memory_space=pltpu.MemorySpace.VMEM)] * 4,
        out_specs=pl.BlockSpec(memory_space=pltpu.MemorySpace.VMEM),
        cost_estimate=cost,
    )(x, y, label, proxies)
    return out[0, 0]


def _reference(x, y, label, proxies):
    # Pure-JAX mirror of the PyTorch forward (f32 throughout).
    xn = _l2_normalize(x.astype(jnp.float32))
    yn = _l2_normalize(y.astype(jnp.float32))
    pn = _l2_normalize(proxies.astype(jnp.float32))
    lbl = label.astype(jnp.float32)

    cos = xn @ pn.T
    cos_t = yn @ pn.T
    pos, neg = 1.0 - cos, jnp.maximum(cos - THRESHOLD, 0.0)
    pos_t, neg_t = 1.0 - cos_t, jnp.maximum(cos_t - THRESHOLD, 0.0)

    p_num = jnp.sum(lbl != 0.0)
    n_num = jnp.sum(lbl == 0.0)
    pos_term = jnp.where(lbl == 1.0, pos, 0.0).sum() / p_num
    neg_term = jnp.where(lbl == 0.0, neg, 0.0).sum() / n_num
    pos_term_t = jnp.where(lbl == 1.0, pos_t, 0.0).sum() / p_num
    neg_term_t = jnp.where(lbl == 0.0, neg_t, 0.0).sum() / n_num

    m = (lbl.sum(1) > 1).astype(jnp.float32)
    pair = m[:, None] * m[None, :]
    gram = lbl @ lbl.T
    zmask = pair * (gram == 0.0)
    zcount = zmask.sum()

    def reg(sim):
        v = ALPHA * jnp.maximum(sim - THRESHOLD, 0.0)
        return jnp.where(zcount > 0, (zmask * v).sum() / jnp.maximum(zcount, 1.0), 0.0)

    return (pos_term + neg_term + pos_term_t + neg_term_t
            + reg(xn @ xn.T) + reg(yn @ yn.T) + reg(xn @ yn.T))


if __name__ == "__main__":
    B, D, C = 32, 16, 24   # batch, hash length (output_dim), numclass

    key = jax.random.PRNGKey(0)
    kx, ky, kp, kl = jax.random.split(key, 4)

    x = jax.random.normal(kx, (B, D), dtype=jnp.float32)
    y = jax.random.normal(ky, (B, D), dtype=jnp.float32)

    # proxies: kaiming_normal_(mode='fan_out') on a (numclass, output_dim) tensor
    #   gain = sqrt(2), fan_out = numclass  ->  std = sqrt(2 / numclass)
    proxies = jax.random.normal(kp, (C, D), dtype=jnp.float32) * np.sqrt(2.0 / C)

    # multi-hot labels (float 0/1); many rows have >1 label so the reg path runs
    label = jax.random.bernoulli(kl, p=0.2, shape=(B, C)).astype(jnp.float32)

    out = multimodal_proxy_loss(x, y, label, proxies)
    out = jax.block_until_ready(out)

    ref = _reference(x, y, label, proxies)
    # tolerance accounts for the intentional bf16 MXU operands in the kernel
    np.testing.assert_allclose(np.asarray(out), np.asarray(ref), rtol=2e-2, atol=2e-2)

    print("KERNEL_OK")
</pallas_src>

<mosaic_0001>
module attributes {stable_mosaic.version = 11 : i64} {
  func.func @_loss_kernel(%arg0: memref<32x16xf32, #tpu.memory_space<vmem>>, %arg1: memref<32x16xf32, #tpu.memory_space<vmem>>, %arg2: memref<32x24xf32, #tpu.memory_space<vmem>>, %arg3: memref<24x16xf32, #tpu.memory_space<vmem>>, %arg4: memref<1x1xf32, #tpu.memory_space<vmem>>) attributes {dimension_semantics = [], scalar_prefetch = 0 : i64, scratch_operands = 0 : i64, tpu.core_type = #tpu.core_type<tc>} {
    %c0 = arith.constant 0 : index
    %c0_0 = arith.constant 0 : index
    %0 = vector.load %arg0[%c0, %c0_0] : memref<32x16xf32, #tpu.memory_space<vmem>>, vector<32x16xf32>
    %c0_1 = arith.constant 0 : index
    %c0_2 = arith.constant 0 : index
    %1 = vector.load %arg1[%c0_1, %c0_2] : memref<32x16xf32, #tpu.memory_space<vmem>>, vector<32x16xf32>
    %c0_3 = arith.constant 0 : index
    %c0_4 = arith.constant 0 : index
    %2 = vector.load %arg2[%c0_3, %c0_4] : memref<32x24xf32, #tpu.memory_space<vmem>>, vector<32x24xf32>
    %c0_5 = arith.constant 0 : index
    %c0_6 = arith.constant 0 : index
    %3 = vector.load %arg3[%c0_5, %c0_6] : memref<24x16xf32, #tpu.memory_space<vmem>>, vector<24x16xf32>
    %4 = arith.mulf %0, %0 : vector<32x16xf32>
    %cst = arith.constant dense<0.000000e+00> : vector<32xf32>
    %5 = vector.multi_reduction <add>, %4, %cst [1] : vector<32x16xf32> to vector<32xf32>
    %6 = vector.shape_cast %5 : vector<32xf32> to vector<32x1xf32>
    %cst_7 = arith.constant 1.000000e-24 : f32
    %7 = vector.broadcast %cst_7 : f32 to vector<32x1xf32>
    %8 = arith.maximumf %6, %7 : vector<32x1xf32>
    %9 = math.rsqrt %8 : vector<32x1xf32>
    %10 = vector.broadcast %9 : vector<32x1xf32> to vector<32x16xf32>
    %11 = arith.mulf %0, %10 : vector<32x16xf32>
    %12 = arith.truncf %11 : vector<32x16xf32> to vector<32x16xbf16>
    %13 = arith.mulf %1, %1 : vector<32x16xf32>
    %cst_8 = arith.constant dense<0.000000e+00> : vector<32xf32>
    %14 = vector.multi_reduction <add>, %13, %cst_8 [1] : vector<32x16xf32> to vector<32xf32>
    %15 = vector.shape_cast %14 : vector<32xf32> to vector<32x1xf32>
    %cst_9 = arith.constant 1.000000e-24 : f32
    %16 = vector.broadcast %cst_9 : f32 to vector<32x1xf32>
    %17 = arith.maximumf %15, %16 : vector<32x1xf32>
    %18 = math.rsqrt %17 : vector<32x1xf32>
    %19 = vector.broadcast %18 : vector<32x1xf32> to vector<32x16xf32>
    %20 = arith.mulf %1, %19 : vector<32x16xf32>
    %21 = arith.truncf %20 : vector<32x16xf32> to vector<32x16xbf16>
    %22 = arith.mulf %3, %3 : vector<24x16xf32>
    %cst_10 = arith.constant dense<0.000000e+00> : vector<24xf32>
    %23 = vector.multi_reduction <add>, %22, %cst_10 [1] : vector<24x16xf32> to vector<24xf32>
    %24 = vector.shape_cast %23 : vector<24xf32> to vector<24x1xf32>
    %cst_11 = arith.constant 1.000000e-24 : f32
    %25 = vector.broadcast %cst_11 : f32 to vector<24x1xf32>
    %26 = arith.maximumf %24, %25 : vector<24x1xf32>
    %27 = math.rsqrt %26 : vector<24x1xf32>
    %28 = vector.broadcast %27 : vector<24x1xf32> to vector<24x16xf32>
    %29 = arith.mulf %3, %28 : vector<24x16xf32>
    %30 = arith.truncf %29 : vector<24x16xf32> to vector<24x16xbf16>
    %cst_12 = arith.constant dense<0.000000e+00> : vector<32xf32>
    %31 = vector.multi_reduction <add>, %2, %cst_12 [1] : vector<32x24xf32> to vector<32xf32>
    %32 = vector.shape_cast %31 : vector<32xf32> to vector<32x1xf32>
    %cst_13 = arith.constant 1.000000e+00 : f32
    %33 = vector.broadcast %cst_13 : f32 to vector<32x1xf32>
    %34 = arith.cmpf ole, %32, %33 : vector<32x1xf32>
    %35 = arith.extui %34 : vector<32x1xi1> to vector<32x1xi32>
    %36 = arith.sitofp %35 : vector<32x1xi32> to vector<32x1xf32>
    %37 = vector.broadcast %36 : vector<32x1xf32> to vector<32x24xf32>
    %38 = arith.addf %2, %37 : vector<32x24xf32>
    %39 = arith.truncf %38 : vector<32x24xf32> to vector<32x24xbf16>
    %cst_14 = arith.constant dense<0.000000e+00> : vector<32x24xf32>
    %40 = tpu.matmul %12, %30, %cst_14 {dimension_numbers = #tpu.dot_dimension_numbers<[1], [1], [0], [0], [0, 0, 1, 0], [], []>} : vector<32x16xbf16>, vector<24x16xbf16>, vector<32x24xf32> -> vector<32x24xf32>
    %cst_15 = arith.constant dense<0.000000e+00> : vector<32x24xf32>
    %41 = tpu.matmul %21, %30, %cst_15 {dimension_numbers = #tpu.dot_dimension_numbers<[1], [1], [0], [0], [0, 0, 1, 0], [], []>} : vector<32x16xbf16>, vector<24x16xbf16>, vector<32x24xf32> -> vector<32x24xf32>
    %cst_16 = arith.constant dense<0.000000e+00> : vector<32x32xf32>
    %42 = tpu.matmul %12, %12, %cst_16 {dimension_numbers = #tpu.dot_dimension_numbers<[1], [1], [0], [0], [0, 0, 1, 0], [], []>} : vector<32x16xbf16>, vector<32x16xbf16>, vector<32x32xf32> -> vector<32x32xf32>
    %cst_17 = arith.constant dense<0.000000e+00> : vector<32x32xf32>
    %43 = tpu.matmul %21, %21, %cst_17 {dimension_numbers = #tpu.dot_dimension_numbers<[1], [1], [0], [0], [0, 0, 1, 0], [], []>} : vector<32x16xbf16>, vector<32x16xbf16>, vector<32x32xf32> -> vector<32x32xf32>
    %cst_18 = arith.constant dense<0.000000e+00> : vector<32x32xf32>
    %44 = tpu.matmul %12, %21, %cst_18 {dimension_numbers = #tpu.dot_dimension_numbers<[1], [1], [0], [0], [0, 0, 1, 0], [], []>} : vector<32x16xbf16>, vector<32x16xbf16>, vector<32x32xf32> -> vector<32x32xf32>
    %cst_19 = arith.constant dense<0.000000e+00> : vector<32x32xf32>
    %45 = tpu.matmul %39, %39, %cst_19 {dimension_numbers = #tpu.dot_dimension_numbers<[1], [1], [0], [0], [0, 0, 1, 0], [], []>} : vector<32x24xbf16>, vector<32x24xbf16>, vector<32x32xf32> -> vector<32x32xf32>
    %cst_20 = arith.constant 1.000000e+00 : f32
    %46 = vector.broadcast %cst_20 : f32 to vector<32x24xf32>
    %47 = arith.subf %46, %40 : vector<32x24xf32>
    %cst_21 = arith.constant 1.000000e+00 : f32
    %48 = vector.broadcast %cst_21 : f32 to vector<32x24xf32>
    %49 = arith.subf %48, %41 : vector<32x24xf32>
    %50 = arith.addf %47, %49 : vector<32x24xf32>
    %51 = arith.mulf %2, %50 : vector<32x24xf32>
    %cst_22 = arith.constant 1.000000e+00 : f32
    %52 = vector.broadcast %cst_22 : f32 to vector<32x24xf32>
    %53 = arith.subf %52, %2 : vector<32x24xf32>
    %cst_23 = arith.constant 1.000000e-01 : f32
    %54 = vector.broadcast %cst_23 : f32 to vector<32x24xf32>
    %55 = arith.subf %40, %54 : vector<32x24xf32>
    %cst_24 = arith.constant 0.000000e+00 : f32
    %56 = vector.broadcast %cst_24 : f32 to vector<32x24xf32>
    %57 = arith.maximumf %55, %56 : vector<32x24xf32>
    %cst_25 = arith.constant 1.000000e-01 : f32
    %58 = vector.broadcast %cst_25 : f32 to vector<32x24xf32>
    %59 = arith.subf %41, %58 : vector<32x24xf32>
    %cst_26 = arith.constant 0.000000e+00 : f32
    %60 = vector.broadcast %cst_26 : f32 to vector<32x24xf32>
    %61 = arith.maximumf %59, %60 : vector<32x24xf32>
    %62 = arith.addf %57, %61 : vector<32x24xf32>
    %63 = arith.mulf %53, %62 : vector<32x24xf32>
    %cst_27 = arith.constant 0.000000e+00 : f32
    %64 = vector.broadcast %cst_27 : f32 to vector<32x32xf32>
    %65 = arith.cmpf oeq, %45, %64 : vector<32x32xf32>
    %66 = arith.extui %65 : vector<32x32xi1> to vector<32x32xi32>
    %67 = arith.sitofp %66 : vector<32x32xi32> to vector<32x32xf32>
    %cst_28 = arith.constant 1.000000e-01 : f32
    %68 = vector.broadcast %cst_28 : f32 to vector<32x32xf32>
    %69 = arith.subf %42, %68 : vector<32x32xf32>
    %cst_29 = arith.constant 0.000000e+00 : f32
    %70 = vector.broadcast %cst_29 : f32 to vector<32x32xf32>
    %71 = arith.maximumf %69, %70 : vector<32x32xf32>
    %cst_30 = arith.constant 1.000000e-01 : f32
    %72 = vector.broadcast %cst_30 : f32 to vector<32x32xf32>
    %73 = arith.subf %43, %72 : vector<32x32xf32>
    %cst_31 = arith.constant 0.000000e+00 : f32
    %74 = vector.broadcast %cst_31 : f32 to vector<32x32xf32>
    %75 = arith.maximumf %73, %74 : vector<32x32xf32>
    %76 = arith.addf %71, %75 : vector<32x32xf32>
    %cst_32 = arith.constant 1.000000e-01 : f32
    %77 = vector.broadcast %cst_32 : f32 to vector<32x32xf32>
    %78 = arith.subf %44, %77 : vector<32x32xf32>
    %cst_33 = arith.constant 0.000000e+00 : f32
    %79 = vector.broadcast %cst_33 : f32 to vector<32x32xf32>
    %80 = arith.maximumf %78, %79 : vector<32x32xf32>
    %81 = arith.addf %76, %80 : vector<32x32xf32>
    %82 = arith.mulf %67, %81 : vector<32x32xf32>
    %cst_34 = arith.constant dense<0.000000e+00> : vector<32xf32>
    %83 = vector.multi_reduction <add>, %51, %cst_34 [1] : vector<32x24xf32> to vector<32xf32>
    %84 = vector.shape_cast %83 : vector<32xf32> to vector<32x1xf32>
    %cst_35 = arith.constant dense<0.000000e+00> : vector<32xf32>
    %85 = vector.multi_reduction <add>, %63, %cst_35 [1] : vector<32x24xf32> to vector<32xf32>
    %86 = vector.shape_cast %85 : vector<32xf32> to vector<32x1xf32>
    %cst_36 = arith.constant dense<0.000000e+00> : vector<32xf32>
    %87 = vector.multi_reduction <add>, %67, %cst_36 [1] : vector<32x32xf32> to vector<32xf32>
    %88 = vector.shape_cast %87 : vector<32xf32> to vector<32x1xf32>
    %cst_37 = arith.constant dense<0.000000e+00> : vector<32xf32>
    %89 = vector.multi_reduction <add>, %82, %cst_37 [1] : vector<32x32xf32> to vector<32xf32>
    %90 = vector.shape_cast %89 : vector<32xf32> to vector<32x1xf32>
    %91 = tpu.iota {dimensions = array<i32: 1>} : vector<32x8xi32>
    %c0_i32 = arith.constant 0 : i32
    %92 = vector.broadcast %c0_i32 : i32 to vector<32x8xi32>
    %93 = arith.cmpi eq, %91, %92 : vector<32x8xi32>
    %c1_i32 = arith.constant 1 : i32
    %94 = vector.broadcast %c1_i32 : i32 to vector<32x8xi32>
    %95 = arith.cmpi eq, %91, %94 : vector<32x8xi32>
    %c2_i32 = arith.constant 2 : i32
    %96 = vector.broadcast %c2_i32 : i32 to vector<32x8xi32>
    %97 = arith.cmpi eq, %91, %96 : vector<32x8xi32>
    %c3_i32 = arith.constant 3 : i32
    %98 = vector.broadcast %c3_i32 : i32 to vector<32x8xi32>
    %99 = arith.cmpi eq, %91, %98 : vector<32x8xi32>
    %c4_i32 = arith.constant 4 : i32
    %100 = vector.broadcast %c4_i32 : i32 to vector<32x8xi32>
    %101 = arith.cmpi eq, %91, %100 : vector<32x8xi32>
    %cst_38 = arith.constant 0.000000e+00 : f32
    %102 = vector.shape_cast %90 : vector<32x1xf32> to vector<32x1xf32>
    %103 = vector.broadcast %102 : vector<32x1xf32> to vector<32x8xf32>
    %104 = vector.broadcast %cst_38 : f32 to vector<32x8xf32>
    %105 = arith.select %101, %103, %104 : vector<32x8xi1>, vector<32x8xf32>
    %106 = vector.shape_cast %88 : vector<32x1xf32> to vector<32x1xf32>
    %107 = vector.broadcast %106 : vector<32x1xf32> to vector<32x8xf32>
    %108 = arith.select %99, %107, %105 : vector<32x8xi1>, vector<32x8xf32>
    %109 = vector.shape_cast %86 : vector<32x1xf32> to vector<32x1xf32>
    %110 = vector.broadcast %109 : vector<32x1xf32> to vector<32x8xf32>
    %111 = arith.select %97, %110, %108 : vector<32x8xi1>, vector<32x8xf32>
    %112 = vector.shape_cast %84 : vector<32x1xf32> to vector<32x1xf32>
    %113 = vector.broadcast %112 : vector<32x1xf32> to vector<32x8xf32>
    %114 = arith.select %95, %113, %111 : vector<32x8xi1>, vector<32x8xf32>
    %115 = vector.shape_cast %32 : vector<32x1xf32> to vector<32x1xf32>
    %116 = vector.broadcast %115 : vector<32x1xf32> to vector<32x8xf32>
    %117 = arith.select %93, %116, %114 : vector<32x8xi1>, vector<32x8xf32>
    %cst_39 = arith.constant dense<0.000000e+00> : vector<8xf32>
    %118 = vector.multi_reduction <add>, %117, %cst_39 [0] : vector<32x8xf32> to vector<8xf32>
    %119 = vector.shape_cast %118 : vector<8xf32> to vector<1x8xf32>
    %120 = vector.extract_strided_slice %119 {offsets = [0, 0], sizes = [1, 1], strides = [1, 1]} : vector<1x8xf32> to vector<1x1xf32>
    %121 = vector.extract %120[0, 0] : f32 from vector<1x1xf32>
    %122 = vector.extract_strided_slice %119 {offsets = [0, 1], sizes = [1, 1], strides = [1, 1]} : vector<1x8xf32> to vector<1x1xf32>
    %123 = vector.extract %122[0, 0] : f32 from vector<1x1xf32>
    %124 = vector.extract_strided_slice %119 {offsets = [0, 2], sizes = [1, 1], strides = [1, 1]} : vector<1x8xf32> to vector<1x1xf32>
    %125 = vector.extract %124[0, 0] : f32 from vector<1x1xf32>
    %126 = vector.extract_strided_slice %119 {offsets = [0, 3], sizes = [1, 1], strides = [1, 1]} : vector<1x8xf32> to vector<1x1xf32>
    %127 = vector.extract %126[0, 0] : f32 from vector<1x1xf32>
    %128 = vector.extract_strided_slice %119 {offsets = [0, 4], sizes = [1, 1], strides = [1, 1]} : vector<1x8xf32> to vector<1x1xf32>
    %129 = vector.extract %128[0, 0] : f32 from vector<1x1xf32>
    %cst_40 = arith.constant 7.680000e+02 : f32
    %130 = arith.subf %cst_40, %121 : f32
    %cst_41 = arith.constant 0.000000e+00 : f32
    %131 = arith.cmpf ogt, %127, %cst_41 : f32
    %cst_42 = arith.constant 3.000000e-01 : f32
    %132 = arith.mulf %cst_42, %129 : f32
    %cst_43 = arith.constant 1.000000e+00 : f32
    %133 = arith.maximumf %127, %cst_43 : f32
    %134 = arith.divf %132, %133 : f32
    %cst_44 = arith.constant 0.000000e+00 : f32
    %135 = arith.select %131, %134, %cst_44 : f32
    %136 = arith.divf %123, %121 : f32
    %137 = arith.divf %125, %130 : f32
    %138 = arith.addf %136, %137 : f32
    %139 = arith.addf %138, %135 : f32
    %140 = vector.broadcast %139 : f32 to vector<1x1xf32>
    %c0_45 = arith.constant 0 : index
    %c0_46 = arith.constant 0 : index
    %141 = vector.load %arg4[%c0_45, %c0_46] : memref<1x1xf32, #tpu.memory_space<vmem>>, vector<1x1xf32>
    tpu.vector_store %arg4[%c0_45, %c0_46], %140 {strides = array<i32>} : memref<1x1xf32, #tpu.memory_space<vmem>>, vector<1x1xf32>,
    return
  }
}

</mosaic_0001>

<llo_original>
// kernel: multimodal_proxy_loss.1
$region0: #{multimodal_proxy_loss.1}
  #allocation0 [shape = 'u32[]', space=smem, size = 0x4, offset = 0x4, fixed_abs, tag = 'smem constant byte address 0x4 - core index']
  #allocation1 [shape = 'u32[72,128]{1,0:T(1,128)}', space=vmem, size = 0x9000, scoped, tag = 'internal scratch']
  %s0 = inlined_call_operand.vmem [shape: f32[32,16], index: 0, kind: input, shape index: {}]
  %s1 = inlined_call_operand.vmem [shape: f32[32,16], index: 1, kind: input, shape index: {}]
  %s2 = inlined_call_operand.vmem [shape: f32[32,24], index: 2, kind: input, shape index: {}]
  %s3 = inlined_call_operand.vmem [shape: f32[24,16], index: 3, kind: input, shape index: {}]
  %s4 = inlined_call_operand.hbm [shape: f32[1,1], index: 4, kind: output, shape index: {}]
  %s5 = sld [smem:[#allocation0]]
  $region26: #{multimodal_proxy_loss.1} parent=0
    _
  %s7 = ssub.s32 1, %s5
  %s8 = scalar_select 0, %s7, %s5
  $region1: #{multimodal_proxy_loss.1} parent=0
    #allocation2 [shape = 'u8[512]{0}', space=vmem, size = 0x400, scoped, tag = 'output window, operand 0, single buffered']
    #allocation3 [shape = 's32[1]{0}', space=sflag, size = 0x4, scoped, tag = 'scoped memory for multimodal_proxy_loss.1']
    %9 = vsyncpa [#allocation3], 0
    // Predicated region
    $region2: #{multimodal_proxy_loss.1} parent=1 // pred_check
      _
    $region3: #{multimodal_proxy_loss.1} parent=1 // pred_check_branch
      %11 = sbr.rel (0) target = $region5
    $region4: #{multimodal_proxy_loss.1} parent=1 // pred_region
      _
    $region5: #{multimodal_proxy_loss.1} parent=1 // pred_fallthru
      _
    // Predicated region
    $region6: #{multimodal_proxy_loss.1} parent=1 // pred_check
      _
    $region7: #{multimodal_proxy_loss.1} parent=1 // pred_check_branch
      %13 = sbr.rel (0) target = $region9
    $region8: #{multimodal_proxy_loss.1} parent=1 // pred_region
      _
    $region9: #{multimodal_proxy_loss.1} parent=1 // pred_fallthru
      _
    // Predicated region
    $region10: #{multimodal_proxy_loss.1} parent=1 // pred_check
      _
    $region11: #{multimodal_proxy_loss.1} parent=1 // pred_check_branch
      %15 = sbr.rel (0) target = $region13
    $region12: #{multimodal_proxy_loss.1} parent=1 // pred_region
      _
    $region13: #{multimodal_proxy_loss.1} parent=1 // pred_fallthru
      _
    // Predicated region
    $region14: #{multimodal_proxy_loss.1} parent=1 // pred_check
      _
    $region15: #{multimodal_proxy_loss.1} parent=1 // pred_check_branch
      %17 = sbr.rel (0) target = $region17
    $region16: #{multimodal_proxy_loss.1} parent=1 // pred_region
      _
    $region17: #{multimodal_proxy_loss.1} parent=1 // pred_fallthru
      _
    %v19 = vld [vmem:[%s0] sm:$0xff]
    %v20 = vld [vmem:[%s0 + $0x8] sm:$0xff]
    %v21 = vld [vmem:[%s0 + $0x10] sm:$0xff]
    %v22 = vld [vmem:[%s0 + $0x18] sm:$0xff]
    %v23 = vld [vmem:[%s1] sm:$0xff]
    %v24 = vld [vmem:[%s1 + $0x8] sm:$0xff]
    %v25 = vld [vmem:[%s1 + $0x10] sm:$0xff]
    %v26 = vld [vmem:[%s1 + $0x18] sm:$0xff]
    %v27 = vld [vmem:[%s2] sm:$0xff]
    %v28 = vld [vmem:[%s2 + $0x8] sm:$0xff]
    %v29 = vld [vmem:[%s2 + $0x10] sm:$0xff]
    %v30 = vld [vmem:[%s2 + $0x18] sm:$0xff]
    %v31 = vld [vmem:[%s3] sm:$0xff]
    %v32 = vld [vmem:[%s3 + $0x8] sm:$0xff]
    %v33 = vld [vmem:[%s3 + $0x10] sm:$0xff]
    %v34 = vmul.f32 %v19, %v19
    %v35 = vmul.f32 %v20, %v20
    %v36 = vmul.f32 %v21, %v21
    %v37 = vmul.f32 %v22, %v22
    %vm38 = vcmask 130048
    %v39 = vsel %vm38, %v34, 0.0
    %40 = vadd.xlane.f32.xlu0 %v39
    %v41 = vpop.xlane.xlu0 %40
    %v42 = vsel %vm38, %v35, 0.0
    %43 = vadd.xlane.f32.xlu0 %v42
    %v44 = vpop.xlane.xlu0 %43
    %v45 = vsel %vm38, %v36, 0.0
    %46 = vadd.xlane.f32.xlu0 %v45
    %v47 = vpop.xlane.xlu0 %46
    %v48 = vsel %vm38, %v37, 0.0
    %49 = vadd.xlane.f32.xlu0 %v48
    %v50 = vpop.xlane.xlu0 %49
    %v51 = vmax.f32 %v41, 1e-24
    %v52 = vmax.f32 %v44, 1e-24
    %v53 = vmax.f32 %v47, 1e-24
    %v54 = vmax.f32 %v50, 1e-24
    %v55 = vrsqrt.pop %v51
    %v56 = vmul.f32 %v55, %v51
    %v57 = vmul.f32 %v56, %v55
    %v58 = vmul.f32 0.5, %v57
    %v59 = vsub.f32 1.5, %v58
    %v60 = vmul.f32 %v55, %v59
    %vm61 = vweird.f32 %v51
    %vm62 = vweird.f32 %v55
    %vm63 = vmor %vm61, %vm62
    %v64 = vsel %vm63, %v55, %v60
    %v65 = vrsqrt.pop %v52
    %v66 = vmul.f32 %v65, %v52
    %v67 = vmul.f32 %v66, %v65
    %v68 = vmul.f32 0.5, %v67
    %v69 = vsub.f32 1.5, %v68
    %v70 = vmul.f32 %v65, %v69
    %vm71 = vweird.f32 %v52
    %vm72 = vweird.f32 %v65
    %vm73 = vmor %vm71, %vm72
    %v74 = vsel %vm73, %v65, %v70
    %v75 = vrsqrt.pop %v53
    %v76 = vmul.f32 %v75, %v53
    %v77 = vmul.f32 %v76, %v75
    %v78 = vmul.f32 0.5, %v77
    %v79 = vsub.f32 1.5, %v78
    %v80 = vmul.f32 %v75, %v79
    %vm81 = vweird.f32 %v53
    %vm82 = vweird.f32 %v75
    %vm83 = vmor %vm81, %vm82
    %v84 = vsel %vm83, %v75, %v80
    %v85 = vrsqrt.pop %v54
    %v86 = vmul.f32 %v85, %v54
    %v87 = vmul.f32 %v86, %v85
    %v88 = vmul.f32 0.5, %v87
    %v89 = vsub.f32 1.5, %v88
    %v90 = vmul.f32 %v85, %v89
    %vm91 = vweird.f32 %v54
    %vm92 = vweird.f32 %v85
    %vm93 = vmor %vm91, %vm92
    %v94 = vsel %vm93, %v85, %v90
    %v95 = vmul.f32 %v19, %v64
    %v96 = vmul.f32 %v20, %v74
    %v97 = vmul.f32 %v21, %v84
    %v98 = vmul.f32 %v22, %v94
    %v99 = vpack.c.bf16 %v96, %v95
    %v100 = vpack.c.bf16 %v98, %v97
    %v101 = vmul.f32 %v23, %v23
    %v102 = vmul.f32 %v24, %v24
    %v103 = vmul.f32 %v25, %v25
    %v104 = vmul.f32 %v26, %v26
    %v105 = vsel %vm38, %v101, 0.0
    %106 = vadd.xlane.f32.xlu0 %v105
    %v107 = vpop.xlane.xlu0 %106
    %v108 = vsel %vm38, %v102, 0.0
    %109 = vadd.xlane.f32.xlu0 %v108
    %v110 = vpop.xlane.xlu0 %109
    %v111 = vsel %vm38, %v103, 0.0
    %112 = vadd.xlane.f32.xlu0 %v111
    %v113 = vpop.xlane.xlu0 %112
    %v114 = vsel %vm38, %v104, 0.0
    %115 = vadd.xlane.f32.xlu0 %v114
    %v116 = vpop.xlane.xlu0 %115
    %v117 = vmax.f32 %v107, 1e-24
    %v118 = vmax.f32 %v110, 1e-24
    %v119 = vmax.f32 %v113, 1e-24
    %v120 = vmax.f32 %v116, 1e-24
    %v121 = vrsqrt.pop %v117
    %v122 = vmul.f32 %v121, %v117
    %v123 = vmul.f32 %v122, %v121
    %v124 = vmul.f32 0.5, %v123
    %v125 = vsub.f32 1.5, %v124
    %v126 = vmul.f32 %v121, %v125
    %vm127 = vweird.f32 %v117
    %vm128 = vweird.f32 %v121
    %vm129 = vmor %vm127, %vm128
    %v130 = vsel %vm129, %v121, %v126
    %v131 = vrsqrt.pop %v118
    %v132 = vmul.f32 %v131, %v118
    %v133 = vmul.f32 %v132, %v131
    %v134 = vmul.f32 0.5, %v133
    %v135 = vsub.f32 1.5, %v134
    %v136 = vmul.f32 %v131, %v135
    %vm137 = vweird.f32 %v118
    %vm138 = vweird.f32 %v131
    %vm139 = vmor %vm137, %vm138
    %v140 = vsel %vm139, %v131, %v136
    %v141 = vrsqrt.pop %v119
    %v142 = vmul.f32 %v141, %v119
    %v143 = vmul.f32 %v142, %v141
    %v144 = vmul.f32 0.5, %v143
    %v145 = vsub.f32 1.5, %v144
    %v146 = vmul.f32 %v141, %v145
    %vm147 = vweird.f32 %v119
    %vm148 = vweird.f32 %v141
    %vm149 = vmor %vm147, %vm148
    %v150 = vsel %vm149, %v141, %v146
    %v151 = vrsqrt.pop %v120
    %v152 = vmul.f32 %v151, %v120
    %v153 = vmul.f32 %v152, %v151
    %v154 = vmul.f32 0.5, %v153
    %v155 = vsub.f32 1.5, %v154
    %v156 = vmul.f32 %v151, %v155
    %vm157 = vweird.f32 %v120
    %vm158 = vweird.f32 %v151
    %vm159 = vmor %vm157, %vm158
    %v160 = vsel %vm159, %v151, %v156
    %v161 = vmul.f32 %v23, %v130
    %v162 = vmul.f32 %v24, %v140
    %v163 = vmul.f32 %v25, %v150
    %v164 = vmul.f32 %v26, %v160
    %v165 = vpack.c.bf16 %v162, %v161
    %v166 = vpack.c.bf16 %v164, %v163
    %v167 = vmul.f32 %v31, %v31
    %v168 = vmul.f32 %v32, %v32
    %v169 = vmul.f32 %v33, %v33
    %v170 = vsel %vm38, %v167, 0.0
    %171 = vadd.xlane.f32.xlu0 %v170
    %v172 = vpop.xlane.xlu0 %171
    %v173 = vsel %vm38, %v168, 0.0
    %174 = vadd.xlane.f32.xlu0 %v173
    %v175 = vpop.xlane.xlu0 %174
    %v176 = vsel %vm38, %v169, 0.0
    %177 = vadd.xlane.f32.xlu0 %v176
    %v178 = vpop.xlane.xlu0 %177
    %v179 = vmax.f32 %v172, 1e-24
    %v180 = vmax.f32 %v175, 1e-24
    %v181 = vmax.f32 %v178, 1e-24
    %v182 = vrsqrt.pop %v179
    %v183 = vmul.f32 %v182, %v179
    %v184 = vmul.f32 %v183, %v182
    %v185 = vmul.f32 0.5, %v184
    %v186 = vsub.f32 1.5, %v185
    %v187 = vmul.f32 %v182, %v186
    %vm188 = vweird.f32 %v179
    %vm189 = vweird.f32 %v182
    %vm190 = vmor %vm188, %vm189
    %v191 = vsel %vm190, %v182, %v187
    %v192 = vrsqrt.pop %v180
    %v193 = vmul.f32 %v192, %v180
    %v194 = vmul.f32 %v193, %v192
    %v195 = vmul.f32 0.5, %v194
    %v196 = vsub.f32 1.5, %v195
    %v197 = vmul.f32 %v192, %v196
    %vm198 = vweird.f32 %v180
    %vm199 = vweird.f32 %v192
    %vm200 = vmor %vm198, %vm199
    %v201 = vsel %vm200, %v192, %v197
    %v202 = vrsqrt.pop %v181
    %v203 = vmul.f32 %v202, %v181
    %v204 = vmul.f32 %v203, %v202
    %v205 = vmul.f32 0.5, %v204
    %v206 = vsub.f32 1.5, %v205
    %v207 = vmul.f32 %v202, %v206
    %vm208 = vweird.f32 %v181
    %vm209 = vweird.f32 %v202
    %vm210 = vmor %vm208, %vm209
    %v211 = vsel %vm210, %v202, %v207
    %v212 = vmul.f32 %v31, %v191
    %v213 = vmul.f32 %v32, %v201
    %v214 = vmul.f32 %v33, %v211
    %v215 = vpack.c.bf16 %v213, %v212
    %v216 = vpack.c.bf16 %v214, %v214
    %vm217 = vcmask 195584
    %v218 = vsel %vm217, %v27, 0.0
    %219 = vadd.xlane.f32.xlu0 %v218
    %v220 = vpop.xlane.xlu0 %219
    %v221 = vsel %vm217, %v28, 0.0
    %222 = vadd.xlane.f32.xlu0 %v221
    %v223 = vpop.xlane.xlu0 %222
    %v224 = vsel %vm217, %v29, 0.0
    %225 = vadd.xlane.f32.xlu0 %v224
    %v226 = vpop.xlane.xlu0 %225
    %v227 = vsel %vm217, %v30, 0.0
    %228 = vadd.xlane.f32.xlu0 %v227
    %v229 = vpop.xlane.xlu0 %228
    %vm230 = vcmp.le.f32.partialorder %v220, 1.0
    %vm231 = vcmp.le.f32.partialorder %v223, 1.0
    %vm232 = vcmp.le.f32.partialorder %v226, 1.0
    %vm233 = vcmp.le.f32.partialorder %v229, 1.0
    %v234 = vsel %vm230, 1, 0
    %v235 = vsel %vm231, 1, 0
    %v236 = vsel %vm232, 1, 0
    %v237 = vsel %vm233, 1, 0
    %v238 = vcvt.s32.f32 %v234
    %v239 = vcvt.s32.f32 %v235
    %v240 = vcvt.s32.f32 %v236
    %v241 = vcvt.s32.f32 %v237
    %v242 = vadd.f32 %v27, %v238
    %v243 = vadd.f32 %v28, %v239
    %v244 = vadd.f32 %v29, %v240
    %v245 = vadd.f32 %v30, %v241
    %v246 = vpack.c.bf16 %v243, %v242
    %v247 = vpack.c.bf16 %v245, %v244
    %v249 = vsel %vm38, %v99, 0
    %v252 = vsel %vm38, %v100, 0
    %v255 = vsel %vm38, %v215, 0
    %v258 = vsel %vm38, %v216, 0
    %260 = vmatpush.bf16.xpose.msra.mxu0 0
    %261 = vmatpush.bf16.xpose.msra.mxu0 0
    %262 = vmatpush.bf16.xpose.msra.mxu0 0
    %263 = vmatpush.bf16.xpose.msra.mxu0 0
    %264 = vmatpush.bf16.xpose.msra.mxu0 0
    %265 = vmatpush.bf16.xpose.msra.mxu0 0
    %266 = vmatpush.bf16.xpose.msra.mxu0 %v258
    %267 = vmatpush.bf16.xpose.msra.mxu0 %v255
    %268 = vmatmul.bf16.gmra.mxu0 %v249
    %v269 = vpop.f32.mrf.mxu0
    %v270 = vadd.f32 0.0, %v269
    %v271 = vpop.f32.mrf.mxu0
    %v272 = vadd.f32 0.0, %v271
    %273 = vmatmul.bf16.gmra.mxu0 %v252
    %v274 = vpop.f32.mrf.mxu0
    %v275 = vadd.f32 0.0, %v274
    %v276 = vpop.f32.mrf.mxu0
    %v277 = vadd.f32 0.0, %v276
    %278 = vdwg.mxu0
    %v280 = vsel %vm38, %v165, 0
    %v283 = vsel %vm38, %v166, 0
    %285 = vmatpush.bf16.xpose.msra.mxu0 0
    %286 = vmatpush.bf16.xpose.msra.mxu0 0
    %287 = vmatpush.bf16.xpose.msra.mxu0 0
    %288 = vmatpush.bf16.xpose.msra.mxu0 0
    %289 = vmatpush.bf16.xpose.msra.mxu0 0
    %290 = vmatpush.bf16.xpose.msra.mxu0 0
    %291 = vmatpush.bf16.xpose.msra.mxu0 %v258
    %292 = vmatpush.bf16.xpose.msra.mxu0 %v255
    %293 = vmatmul.bf16.gmra.mxu0 %v280
    %v294 = vpop.f32.mrf.mxu0
    %v295 = vadd.f32 0.0, %v294
    %v296 = vpop.f32.mrf.mxu0
    %v297 = vadd.f32 0.0, %v296
    %298 = vmatmul.bf16.gmra.mxu0 %v283
    %v299 = vpop.f32.mrf.mxu0
    %v300 = vadd.f32 0.0, %v299
    %v301 = vpop.f32.mrf.mxu0
    %v302 = vadd.f32 0.0, %v301
    %303 = vdwg.mxu0
    %304 = vmatpush.bf16.xpose.msra.mxu0 0
    %305 = vmatpush.bf16.xpose.msra.mxu0 0
    %306 = vmatpush.bf16.xpose.msra.mxu0 0
    %307 = vmatpush.bf16.xpose.msra.mxu0 0
    %308 = vmatpush.bf16.xpose.msra.mxu0 0
    %309 = vmatpush.bf16.xpose.msra.mxu0 0
    %310 = vmatpush.bf16.xpose.msra.mxu0 %v252
    %311 = vmatpush.bf16.xpose.msra.mxu0 %v249
    %312 = vmatmul.bf16.gmra.mxu0 %v249
    %v313 = vpop.f32.mrf.mxu0
    %v314 = vadd.f32 0.0, %v313
    %v315 = vpop.f32.mrf.mxu0
    %v316 = vadd.f32 0.0, %v315
    %317 = vmatmul.bf16.gmra.mxu0 %v252
    %v318 = vpop.f32.mrf.mxu0
    %v319 = vadd.f32 0.0, %v318
    %v320 = vpop.f32.mrf.mxu0
    %v321 = vadd.f32 0.0, %v320
    %322 = vdwg.mxu0
    %323 = vmatpush.bf16.xpose.msra.mxu0 0
    %324 = vmatpush.bf16.xpose.msra.mxu0 0
    %325 = vmatpush.bf16.xpose.msra.mxu0 0
    %326 = vmatpush.bf16.xpose.msra.mxu0 0
    %327 = vmatpush.bf16.xpose.msra.mxu0 0
    %328 = vmatpush.bf16.xpose.msra.mxu0 0
    %329 = vmatpush.bf16.xpose.msra.mxu0 %v283
    %330 = vmatpush.bf16.xpose.msra.mxu0 %v280
    %331 = vmatmul.bf16.gmra.mxu0 %v280
    %v332 = vpop.f32.mrf.mxu0
    %v333 = vadd.f32 0.0, %v332
    %v334 = vpop.f32.mrf.mxu0
    %v335 = vadd.f32 0.0, %v334
    %336 = vmatmul.bf16.gmra.mxu0 %v283
    %v337 = vpop.f32.mrf.mxu0
    %v338 = vadd.f32 0.0, %v337
    %v339 = vpop.f32.mrf.mxu0
    %v340 = vadd.f32 0.0, %v339
    %341 = vdwg.mxu0
    %342 = vmatpush.bf16.xpose.msra.mxu0 0
    %343 = vmatpush.bf16.xpose.msra.mxu0 0
    %344 = vmatpush.bf16.xpose.msra.mxu0 0
    %345 = vmatpush.bf16.xpose.msra.mxu0 0
    %346 = vmatpush.bf16.xpose.msra.mxu0 0
    %347 = vmatpush.bf16.xpose.msra.mxu0 0
    %348 = vmatpush.bf16.xpose.msra.mxu0 %v283
    %349 = vmatpush.bf16.xpose.msra.mxu0 %v280
    %350 = vmatmul.bf16.gmra.mxu0 %v249
    %v351 = vpop.f32.mrf.mxu0
    %v352 = vadd.f32 0.0, %v351
    %v353 = vpop.f32.mrf.mxu0
    %v354 = vadd.f32 0.0, %v353
    %355 = vmatmul.bf16.gmra.mxu0 %v252
    %v356 = vpop.f32.mrf.mxu0
    %v357 = vadd.f32 0.0, %v356
    %v358 = vpop.f32.mrf.mxu0
    %v359 = vadd.f32 0.0, %v358
    %360 = vdwg.mxu0
    %v362 = vsel %vm217, %v246, 0
    %v365 = vsel %vm217, %v247, 0
    %367 = vmatpush.bf16.xpose.msra.mxu0 0
    %368 = vmatpush.bf16.xpose.msra.mxu0 0
    %369 = vmatpush.bf16.xpose.msra.mxu0 0
    %370 = vmatpush.bf16.xpose.msra.mxu0 0
    %371 = vmatpush.bf16.xpose.msra.mxu0 0
    %372 = vmatpush.bf16.xpose.msra.mxu0 0
    %373 = vmatpush.bf16.xpose.msra.mxu0 %v365
    %374 = vmatpush.bf16.xpose.msra.mxu0 %v362
    %375 = vmatmul.bf16.gmra.mxu0 %v362
    %v376 = vpop.f32.mrf.mxu0
    %v377 = vadd.f32 0.0, %v376
    %v378 = vpop.f32.mrf.mxu0
    %v379 = vadd.f32 0.0, %v378
    %380 = vmatmul.bf16.gmra.mxu0 %v365
    %v381 = vpop.f32.mrf.mxu0
    %v382 = vadd.f32 0.0, %v381
    %v383 = vpop.f32.mrf.mxu0
    %v384 = vadd.f32 0.0, %v383
    %385 = vdwg.mxu0
    %v386 = vsub.f32 1.0, %v270
    %v387 = vsub.f32 1.0, %v272
    %v388 = vsub.f32 1.0, %v275
    %v389 = vsub.f32 1.0, %v277
    %v390 = vsub.f32 1.0, %v295
    %v391 = vsub.f32 1.0, %v297
    %v392 = vsub.f32 1.0, %v300
    %v393 = vsub.f32 1.0, %v302
    %v394 = vadd.f32 %v386, %v390
    %v395 = vadd.f32 %v387, %v391
    %v396 = vadd.f32 %v388, %v392
    %v397 = vadd.f32 %v389, %v393
    %v398 = vmul.f32 %v27, %v394
    %v399 = vmul.f32 %v28, %v395
    %v400 = vmul.f32 %v29, %v396
    %v401 = vmul.f32 %v30, %v397
    %v402 = vsub.f32 1.0, %v27
    %v403 = vsub.f32 1.0, %v28
    %v404 = vsub.f32 1.0, %v29
    %v405 = vsub.f32 1.0, %v30
    %v406 = vsub.f32 %v270, 0.1
    %v407 = vsub.f32 %v272, 0.1
    %v408 = vsub.f32 %v275, 0.1
    %v409 = vsub.f32 %v277, 0.1
    %v410 = vmax.f32 %v406, 0.0
    %v411 = vmax.f32 %v407, 0.0
    %v412 = vmax.f32 %v408, 0.0
    %v413 = vmax.f32 %v409, 0.0
    %v414 = vsub.f32 %v295, 0.1
    %v415 = vsub.f32 %v297, 0.1
    %v416 = vsub.f32 %v300, 0.1
    %v417 = vsub.f32 %v302, 0.1
    %v418 = vmax.f32 %v414, 0.0
    %v419 = vmax.f32 %v415, 0.0
    %v420 = vmax.f32 %v416, 0.0
    %v421 = vmax.f32 %v417, 0.0
    %v422 = vadd.f32 %v410, %v418
    %v423 = vadd.f32 %v411, %v419
    %v424 = vadd.f32 %v412, %v420
    %v425 = vadd.f32 %v413, %v421
    %v426 = vmul.f32 %v402, %v422
    %v427 = vmul.f32 %v403, %v423
    %v428 = vmul.f32 %v404, %v424
    %v429 = vmul.f32 %v405, %v425
    %vm430 = vcmp.eq.f32.partialorder %v377, 0.0
    %vm431 = vcmp.eq.f32.partialorder %v379, 0.0
    %vm432 = vcmp.eq.f32.partialorder %v382, 0.0
    %vm433 = vcmp.eq.f32.partialorder %v384, 0.0
    %v434 = vsel %vm430, 1, 0
    %v435 = vsel %vm431, 1, 0
    %v436 = vsel %vm432, 1, 0
    %v437 = vsel %vm433, 1, 0
    %v438 = vcvt.s32.f32 %v434
    %v439 = vcvt.s32.f32 %v435
    %v440 = vcvt.s32.f32 %v436
    %v441 = vcvt.s32.f32 %v437
    %v442 = vsub.f32 %v314, 0.1
    %v443 = vsub.f32 %v316, 0.1
    %v444 = vsub.f32 %v319, 0.1
    %v445 = vsub.f32 %v321, 0.1
    %v446 = vmax.f32 %v442, 0.0
    %v447 = vmax.f32 %v443, 0.0
    %v448 = vmax.f32 %v444, 0.0
    %v449 = vmax.f32 %v445, 0.0
    %v450 = vsub.f32 %v333, 0.1
    %v451 = vsub.f32 %v335, 0.1
    %v452 = vsub.f32 %v338, 0.1
    %v453 = vsub.f32 %v340, 0.1
    %v454 = vmax.f32 %v450, 0.0
    %v455 = vmax.f32 %v451, 0.0
    %v456 = vmax.f32 %v452, 0.0
    %v457 = vmax.f32 %v453, 0.0
    %v458 = vadd.f32 %v446, %v454
    %v459 = vadd.f32 %v447, %v455
    %v460 = vadd.f32 %v448, %v456
    %v461 = vadd.f32 %v449, %v457
    %v462 = vsub.f32 %v352, 0.1
    %v463 = vsub.f32 %v354, 0.1
    %v464 = vsub.f32 %v357, 0.1
    %v465 = vsub.f32 %v359, 0.1
    %v466 = vmax.f32 %v462, 0.0
    %v467 = vmax.f32 %v463, 0.0
    %v468 = vmax.f32 %v464, 0.0
    %v469 = vmax.f32 %v465, 0.0
    %v470 = vadd.f32 %v458, %v466
    %v471 = vadd.f32 %v459, %v467
    %v472 = vadd.f32 %v460, %v468
    %v473 = vadd.f32 %v461, %v469
    %v474 = vmul.f32 %v438, %v470
    %v475 = vmul.f32 %v439, %v471
    %v476 = vmul.f32 %v440, %v472
    %v477 = vmul.f32 %v441, %v473
    %v478 = vsel %vm217, %v398, 0.0
    %479 = vadd.xlane.f32.xlu0 %v478
    %v480 = vpop.xlane.xlu0 %479
    %v481 = vsel %vm217, %v399, 0.0
    %482 = vadd.xlane.f32.xlu0 %v481
    %v483 = vpop.xlane.xlu0 %482
    %v484 = vsel %vm217, %v400, 0.0
    %485 = vadd.xlane.f32.xlu0 %v484
    %v486 = vpop.xlane.xlu0 %485
    %v487 = vsel %vm217, %v401, 0.0
    %488 = vadd.xlane.f32.xlu0 %v487
    %v489 = vpop.xlane.xlu0 %488
    %v490 = vsel %vm217, %v426, 0.0
    %491 = vadd.xlane.f32.xlu0 %v490
    %v492 = vpop.xlane.xlu0 %491
    %v493 = vsel %vm217, %v427, 0.0
    %494 = vadd.xlane.f32.xlu0 %v493
    %v495 = vpop.xlane.xlu0 %494
    %v496 = vsel %vm217, %v428, 0.0
    %497 = vadd.xlane.f32.xlu0 %v496
    %v498 = vpop.xlane.xlu0 %497
    %v499 = vsel %vm217, %v429, 0.0
    %500 = vadd.xlane.f32.xlu0 %v499
    %v501 = vpop.xlane.xlu0 %500
    %vm502 = vcmask 261120
    %v503 = vsel %vm502, %v438, 0.0
    %504 = vadd.xlane.f32.xlu0 %v503
    %v505 = vpop.xlane.xlu0 %504
    %v506 = vsel %vm502, %v439, 0.0
    %507 = vadd.xlane.f32.xlu0 %v506
    %v508 = vpop.xlane.xlu0 %507
    %v509 = vsel %vm502, %v440, 0.0
    %510 = vadd.xlane.f32.xlu0 %v509
    %v511 = vpop.xlane.xlu0 %510
    %v512 = vsel %vm502, %v441, 0.0
    %513 = vadd.xlane.f32.xlu0 %v512
    %v514 = vpop.xlane.xlu0 %513
    %v515 = vsel %vm502, %v474, 0.0
    %516 = vadd.xlane.f32.xlu0 %v515
    %v517 = vpop.xlane.xlu0 %516
    %v518 = vsel %vm502, %v475, 0.0
    %519 = vadd.xlane.f32.xlu0 %v518
    %v520 = vpop.xlane.xlu0 %519
    %v521 = vsel %vm502, %v476, 0.0
    %522 = vadd.xlane.f32.xlu0 %v521
    %v523 = vpop.xlane.xlu0 %522
    %v524 = vsel %vm502, %v477, 0.0
    %525 = vadd.xlane.f32.xlu0 %v524
    %v526 = vpop.xlane.xlu0 %525
    %v527 = vlaneseq
    %v528 = vand.u32 %v527, 127
    %vm529 = vcmp.eq.s32.totalorder %v528, 0
    %vm530 = vcmp.eq.s32.totalorder %v528, 1
    %vm531 = vcmp.eq.s32.totalorder %v528, 2
    %vm532 = vcmp.eq.s32.totalorder %v528, 3
    %vm533 = vcmp.eq.s32.totalorder %v528, 4
    %v534 = vsel %vm533, %v517, 0.0
    %v535 = vsel %vm533, %v520, 0.0
    %v536 = vsel %vm533, %v523, 0.0
    %v537 = vsel %vm533, %v526, 0.0
    %v538 = vsel %vm532, %v505, %v534
    %v539 = vsel %vm532, %v508, %v535
    %v540 = vsel %vm532, %v511, %v536
    %v541 = vsel %vm532, %v514, %v537
    %v542 = vsel %vm531, %v492, %v538
    %v543 = vsel %vm531, %v495, %v539
    %v544 = vsel %vm531, %v498, %v540
    %v545 = vsel %vm531, %v501, %v541
    %v546 = vsel %vm530, %v480, %v542
    %v547 = vsel %vm530, %v483, %v543
    %v548 = vsel %vm530, %v486, %v544
    %v549 = vsel %vm530, %v489, %v545
    %v550 = vsel %vm529, %v220, %v546
    %v551 = vsel %vm529, %v223, %v547
    %v552 = vsel %vm529, %v226, %v548
    %v553 = vsel %vm529, %v229, %v549
    %vm554 = vcmask 64512
    %v555 = vsel %vm554, %v550, 0.0
    %v556 = vsel %vm554, %v551, 0.0
    %v557 = vadd.f32 %v555, %v556
    %v558 = vsel %vm554, %v552, 0.0
    %v559 = vadd.f32 %v557, %v558
    %v560 = vsel %vm554, %v553, 0.0
    %v561 = vadd.f32 %v559, %v560
    %v562 = vrot.slane %v561, 4
    %v563 = vadd.f32 %v561, %v562
    %v564 = vrot.slane %v563, 2
    %v565 = vadd.f32 %v563, %v564
    %v566 = vrot.slane %v565, 1
    %v567 = vadd.f32 %v565, %v566
    %s568 = vtos %v567
    %569 = vrot.lane.b32.xlu0 %v567, 127
    %v570 = vpop.permute.xlu0 %569
    %s571 = vtos %v570
    %572 = vrot.lane.b32.xlu0 %v567, 126
    %v573 = vpop.permute.xlu0 %572
    %s574 = vtos %v573
    %575 = vrot.lane.b32.xlu0 %v567, 125
    %v576 = vpop.permute.xlu0 %575
    %s577 = vtos %v576
    %578 = vrot.lane.b32.xlu0 %v567, 124
    %v579 = vpop.permute.xlu0 %578
    %s580 = vtos %v579
    %s581 = ssub.f32 768.0, %s568
    %p582 = scmp.gt.f32.partialorder %s577, 0.0
    %s583 = smul.f32 %s580, 0.3
    %s584 = smax.f32 %s577, 1.0
    %v585 = vstv %s584
    %v586 = vrcp.pop %v585
    %v587 = vmul.f32 %v585, %v586
    %v588 = vsub.f32 1.0, %v587
    %v589 = vmul.f32 %v586, %v588
    %v590 = vadd.f32 %v586, %v589
    %vm591 = vweird.f32 %v585
    %vm592 = vweird.f32 %v586
    %vm593 = vmor %vm591, %vm592
    %v594 = vsel %vm593, %v586, %v590
    %v595 = vand.u32 2147483647, %v585
    %vm596 = vcmp.eq.f32.partialorder %v595, 8.507059e+37
    %v597 = vand.u32 %v585, 2147483648
    %v598 = vor.u32 1.1754944e-38, %v597
    %v599 = vsel %vm596, %v598, %v594
    %s600 = vtos %v599
    %s601 = smul.f32 %s583, %s600
    %s602 = scalar_select %p582, %s601, 0.0
    %v603 = vstv %s568
    %v604 = vrcp.pop %v603
    %v605 = vmul.f32 %v603, %v604
    %v606 = vsub.f32 1.0, %v605
    %v607 = vmul.f32 %v604, %v606
    %v608 = vadd.f32 %v604, %v607
    %vm609 = vweird.f32 %v603
    %vm610 = vweird.f32 %v604
    %vm611 = vmor %vm609, %vm610
    %v612 = vsel %vm611, %v604, %v608
    %v613 = vand.u32 2147483647, %v603
    %vm614 = vcmp.eq.f32.partialorder %v613, 8.507059e+37
    %v615 = vand.u32 %v603, 2147483648
    %v616 = vor.u32 1.1754944e-38, %v615
    %v617 = vsel %vm614, %v616, %v612
    %s618 = vtos %v617
    %s619 = smul.f32 %s571, %s618
    %v620 = vstv %s581
    %v621 = vrcp.pop %v620
    %v622 = vmul.f32 %v620, %v621
    %v623 = vsub.f32 1.0, %v622
    %v624 = vmul.f32 %v621, %v623
    %v625 = vadd.f32 %v621, %v624
    %vm626 = vweird.f32 %v620
    %vm627 = vweird.f32 %v621
    %vm628 = vmor %vm626, %vm627
    %v629 = vsel %vm628, %v621, %v625
    %v630 = vand.u32 2147483647, %v620
    %vm631 = vcmp.eq.f32.partialorder %v630, 8.507059e+37
    %v632 = vand.u32 %v620, 2147483648
    %v633 = vor.u32 1.1754944e-38, %v632
    %v634 = vsel %vm631, %v633, %v629
    %s635 = vtos %v634
    %s636 = smul.f32 %s574, %s635
    %s637 = sadd.f32 %s619, %s636
    %s638 = sadd.f32 %s637, %s602
    %v639 = vstv %s638
    %vm640 = vcmask 0
    %641 = vst.msk [vmem:[#allocation2] sm:$0x1] %vm640, %v639
    // Predicated region
    $region18: #{multimodal_proxy_loss.1} parent=1 // pred_check
      _
    $region19: #{multimodal_proxy_loss.1} parent=1 // pred_check_branch
      %643 = sbr.rel (0) target = $region21
    $region20: #{multimodal_proxy_loss.1} parent=1 // pred_region
      %645 = vsyncadd [#allocation3], 0
      %s647 = sshll.u32 [#allocation2], 4
      %s648 = int_to_ptr.vmem [resolvable:$true] %s647
      %s649 = sshll.u32 %s4, 4
      %s650 = int_to_ptr.hbm [resolvable:$true] %s649
      %652 = dma.vmem_to_hbm [thread:$0]  %s648, 16, %s650, [#allocation3]
    $region21: #{multimodal_proxy_loss.1} parent=1 // pred_fallthru
      _
    // Predicated region
    $region22: #{multimodal_proxy_loss.1} parent=1 // pred_check
      _
    $region23: #{multimodal_proxy_loss.1} parent=1 // pred_check_branch
      %654 = sbr.rel (0) target = $region25
    $region24: #{multimodal_proxy_loss.1} parent=1 // pred_region
      %656 = dma.done [#allocation3], 16
    $region25: #{multimodal_proxy_loss.1} parent=1 // pred_fallthru
      _
    %657 = vsyncpa [#allocation3], 1

</llo_original>
